<compile_context>
chip_gen: v6e
topology: v6e:2x2x1
jax: 0.10.0
libtpu: 0.0.40
codegen_flags: <defaults>
</compile_context>

<pallas_src>
import math
import functools

import jax
import jax.numpy as jnp
from jax.experimental import pallas as pl
from jax.experimental.pallas import tpu as pltpu


# ---------------------------------------------------------------------------
# Kernel: synthesize pe[t, j] = sin(t * inv_freq[j] + phase[j]) for the rows
# of this sequence tile.  inv_freq/phase are precomputed (1, D) rows that stay
# resident in VMEM across all grid steps.
# ---------------------------------------------------------------------------
def _pe_kernel(inv_freq_ref, phase_ref, pe_ref, *, tile_t, d_model):
    i = pl.program_id(0)
    row = jax.lax.broadcasted_iota(jnp.int32, (tile_t, d_model), 0)
    pos = (i * tile_t + row).astype(jnp.float32)           # absolute position t
    pe_ref[...] = jnp.sin(pos * inv_freq_ref[...] + phase_ref[...]).astype(
        pe_ref.dtype)


def _pick_tile_t(T, D):
    """Largest row tile that (a) divides T, (b) stays well under the scoped
    VMEM limit on every generation (budget 4 MiB per block; double-buffered
    worst case 8 MiB < 16 MiB v5e default), and (c) leaves >= 2 grid steps
    when T allows, so v7x megacore can use both TensorCores."""
    budget_bytes = 4 * 1024 * 1024
    fallback = None
    for cand in (1024, 512, 256, 128, 64, 32, 16, 8):
        if cand <= T and T % cand == 0 and cand * D * 4 <= budget_bytes:
            if T // cand >= 2:
                return cand
            if fallback is None:
                fallback = cand
    if fallback is not None:
        return fallback
    return T  # tiny / oddly-sized T: single full-extent block


# ---------------------------------------------------------------------------
# Wrapper
# ---------------------------------------------------------------------------
def relative_positional_encoding_pallas(inputs, *, tile_t=None):
    """inputs: (seq_len, batch, d_model).

    Returns (inputs_out, pos_embed) matching the PyTorch forward in eval mode:
      inputs_out == dropout(inputs) == inputs            (no copy, no kernel)
      pos_embed  == dropout(pe[:T])  shape (T, 1, d_model), float32
    """
    T, B, D = inputs.shape
    assert D % 2 == 0, "d_model must be even for sin/cos interleave"
    assert T < (1 << 24), "float32 position index loses precision beyond 2^24"

    if tile_t is None:
        tile_t = _pick_tile_t(T, D)
    assert T % tile_t == 0, "tile_t must divide seq_len"
    grid = (T // tile_t,)

    # Hoisted per-lane coefficients (computed once, on host/XLA side):
    #   inv_freq[j] = exp(-2*(j//2) * ln(10000)/D)   (even/odd lane pairs share)
    #   phase[j]    = (j % 2) * pi/2                 (odd lanes -> cos)
    half = jnp.exp(
        jnp.arange(0, D, 2, dtype=jnp.float32) * (-math.log(10000.0) / D))
    inv_freq = jnp.repeat(half, 2).reshape(1, D)
    phase = jnp.tile(jnp.array([0.0, math.pi / 2.0], jnp.float32),
                     D // 2).reshape(1, D)

    kernel = functools.partial(_pe_kernel, tile_t=tile_t, d_model=D)

    pe = pl.pallas_call(
        kernel,
        out_shape=jax.ShapeDtypeStruct((T, D), jnp.float32),
        grid=grid,
        in_specs=[
            pl.BlockSpec((1, D), lambda i: (0, 0)),   # inv_freq, VMEM-resident
            pl.BlockSpec((1, D), lambda i: (0, 0)),   # phase,    VMEM-resident
        ],
        out_specs=pl.BlockSpec((tile_t, D), lambda i: (i, 0)),
        compiler_params=pltpu.CompilerParams(dimension_semantics=("parallel",)),
    )(inv_freq, phase)

    # dropout(inputs) is identity in eval mode: no pass-through copy needed.
    return inputs, pe.reshape(T, 1, D)


# ---------------------------------------------------------------------------
# Pure-JAX reference mirroring the PyTorch __init__ + forward (eval mode)
# ---------------------------------------------------------------------------
def relative_positional_encoding_reference(inputs, max_len):
    T, B, D = inputs.shape
    position = jnp.arange(max_len, dtype=jnp.float32)[:, None]
    div_term = jnp.exp(
        jnp.arange(0, D, 2, dtype=jnp.float32) * (-math.log(10000.0) / D))
    pe = jnp.zeros((max_len, 1, D), jnp.float32)
    pe = pe.at[:, 0, 0::2].set(jnp.sin(position * div_term))
    pe = pe.at[:, 0, 1::2].set(jnp.cos(position * div_term))
    return inputs, pe[:T]


if __name__ == "__main__":
    # Small shapes consistent with the module: seq=16, batch=2, d_model=128
    # (lane-dense last dim), max_len=64 for the reference table.
    T, B, D, MAX_LEN = 16, 2, 128, 64
    key = jax.random.PRNGKey(0)
    inputs = jax.random.normal(key, (T, B, D), jnp.float32)

    ref_x, ref_pe = relative_positional_encoding_reference(inputs, MAX_LEN)

    # 1) auto tile (picks tile_t=8 -> 2-step parallel grid at this size)
    out_x, out_pe = relative_positional_encoding_pallas(inputs)
    out_x = jax.block_until_ready(out_x)
    out_pe = jax.block_until_ready(out_pe)
    assert out_x.shape == (T, B, D) and out_pe.shape == (T, 1, D)
    assert jnp.array_equal(out_x, ref_x), "inputs pass-through mismatch"
    assert jnp.allclose(out_pe, ref_pe, rtol=1e-5, atol=1e-5), (
        f"pe max diff {float(jnp.max(jnp.abs(out_pe - ref_pe)))}")

    # 2) explicit single-step grid (tile_t = T) to exercise full-extent blocks
    out_x2, out_pe2 = relative_positional_encoding_pallas(inputs, tile_t=T)
    out_x2 = jax.block_until_ready(out_x2)
    out_pe2 = jax.block_until_ready(out_pe2)
    assert jnp.array_equal(out_x2, ref_x)
    assert jnp.allclose(out_pe2, ref_pe, rtol=1e-5, atol=1e-5)

    print("KERNEL_OK")
</pallas_src>

<mosaic_0001>
module attributes {stable_mosaic.version = 11 : i64} {
  func.func @_pe_kernel(%arg0: i32, %arg1: memref<1x128xf32, #tpu.memory_space<vmem>>, %arg2: memref<1x128xf32, #tpu.memory_space<vmem>>, %arg3: memref<8x128xf32, #tpu.memory_space<vmem>>) attributes {dimension_semantics = [#tpu.dimension_semantics<parallel>], iteration_bounds = array<i64: 2>, scalar_prefetch = 0 : i64, scratch_operands = 0 : i64, tpu.core_type = #tpu.core_type<tc>, window_params = [{pipeline_mode = #tpu.pipeline_mode<synchronous>, transform_indices = @transform_0, window_bounds = array<i64: 1, 128>}, {pipeline_mode = #tpu.pipeline_mode<synchronous>, transform_indices = @transform_1, window_bounds = array<i64: 1, 128>}, {transform_indices = @transform_2, window_bounds = array<i64: 8, 128>}]} {
    %0 = tpu.iota {dimensions = array<i32: 0>} : vector<8x128xi32>
    %c8_i32 = arith.constant 8 : i32
    %1 = arith.muli %arg0, %c8_i32 : i32
    %2 = vector.broadcast %1 : i32 to vector<8x128xi32>
    %3 = arith.addi %2, %0 : vector<8x128xi32>
    %4 = arith.sitofp %3 : vector<8x128xi32> to vector<8x128xf32>
    %c0 = arith.constant 0 : index
    %c0_0 = arith.constant 0 : index
    %5 = vector.load %arg1[%c0, %c0_0] : memref<1x128xf32, #tpu.memory_space<vmem>>, vector<1x128xf32>
    %6 = vector.broadcast %5 : vector<1x128xf32> to vector<8x128xf32>
    %7 = arith.mulf %4, %6 : vector<8x128xf32>
    %c0_1 = arith.constant 0 : index
    %c0_2 = arith.constant 0 : index
    %8 = vector.load %arg2[%c0_1, %c0_2] : memref<1x128xf32, #tpu.memory_space<vmem>>, vector<1x128xf32>
    %9 = vector.broadcast %8 : vector<1x128xf32> to vector<8x128xf32>
    %10 = arith.addf %7, %9 : vector<8x128xf32>
    %11 = math.sin %10 : vector<8x128xf32>
    %c0_3 = arith.constant 0 : index
    %c0_4 = arith.constant 0 : index
    %12 = vector.load %arg3[%c0_3, %c0_4] : memref<8x128xf32, #tpu.memory_space<vmem>>, vector<8x128xf32>
    tpu.vector_store %arg3[%c0_3, %c0_4], %11 {strides = array<i32>} : memref<8x128xf32, #tpu.memory_space<vmem>>, vector<8x128xf32>,
    return
  }
  func.func @transform_0(%arg0: i32) -> (i32, i32) {
    %c0_i32 = arith.constant 0 : i32
    %c0_i32_0 = arith.constant 0 : i32
    %c0_i32_1 = arith.constant 0 : i32
    return %c0_i32, %c0_i32_0 : i32, i32
  }
  func.func @transform_1(%arg0: i32) -> (i32, i32) {
    %c0_i32 = arith.constant 0 : i32
    %c0_i32_0 = arith.constant 0 : i32
    %c0_i32_1 = arith.constant 0 : i32
    return %c0_i32, %c0_i32_0 : i32, i32
  }
  func.func @transform_2(%arg0: i32) -> (i32, i32) {
    %c0_i32 = arith.constant 0 : i32
    %c0_i32_0 = arith.constant 0 : i32
    return %arg0, %c0_i32 : i32, i32
  }
}

</mosaic_0001>

<llo_original>
// kernel: tpu_custom_call.1
$region0: #{tpu_custom_call.1}
  #allocation0 [shape = 'u32[]', space=smem, size = 0x4, offset = 0x4, fixed_abs, tag = 'smem constant byte address 0x4 - core index']
  #allocation1 [shape = 'u32[144,128]{1,0:T(1,128)}', space=vmem, size = 0x12000, scoped, tag = 'internal scratch']
  %s0 = inlined_call_operand.hbm [shape: f32[1,128], index: 0, kind: input, shape index: {}]
  %s1 = inlined_call_operand.vmem [shape: f32[1,128], index: 1, kind: input, shape index: {}]
  %s2 = inlined_call_operand.hbm [shape: f32[16,128], index: 2, kind: output, shape index: {}]
  %s3 = sld [smem:[#allocation0]]
  $region45: #{tpu_custom_call.1} parent=0
    _
  %s5 = ssub.s32 1, %s3
  %s6 = scalar_select 0, %s5, %s3
  $region1: #{tpu_custom_call.1} parent=0
    #allocation2 [shape = 'u8[512]{0}', space=vmem, size = 0x400, scoped, tag = 'input window, operand 0, single buffered']
    #allocation3 [shape = 's32[2]{0}', space=sflag, size = 0x8, scoped, tag = 'scoped memory for tpu_custom_call.1']
    #allocation4 [shape = 's32[2]{0}', space=sflag, size = 0x8, scoped, tag = 'scoped memory for tpu_custom_call.1']
    #allocation5 [shape = 'u8[8192]{0}', space=vmem, size = 0x2000, scoped, tag = 'output window, operand 0']
    %7 = vsyncpa [#allocation3], 0
    %8 = vsyncpa [#allocation4], 0
    %s9 = scalar_lea.sflag [#allocation4], 1
    %10 = vsyncpa %s9, 0
    loop: start=0, step=1, limit=4
    $region2: #{tpu_custom_call.1} parent=1 // loop_pre_header
      _
    $region3: #{tpu_custom_call.1} parent=1 // loop_header
      %s12 = sphi 0, %s16
      %p13 = scmp.ge.s32.totalorder %s12, 4
      %s20 = sphi 0, %s20
      %s22 = sphi 0, %s20
      %s23 = sphi 0, %s22
      %s37 = sphi 0, %s23
      %s41 = sphi 0, %s41
      %s43 = sphi 0, %s41
      %s44 = sphi 0, %s43
      %s58 = sphi 0, %s44
      %s64 = sphi 0, %s66
      %s67 = sphi 0, %s64
      %s68 = sphi 0, %s67
      %s84 = sphi 0, %s68
    $region4: #{tpu_custom_call.1} parent=1 // loop_header_branch
      %15 = sbr.rel (%p13) target = $region8
    $region5: #{tpu_custom_call.1} parent=1 // loop_body
      %s17 = ssub.s32 %s12, 1
      %s18 = ssub.s32 %s12, 2
      %s19 = sadd.s32 %s12, 1
      %s21 = sadd.s32 %s20, 1
      %p24 = scmp.eq.s32.totalorder %s12, 1
      %p25 = scmp.ne.s32.totalorder %s20, %s22
      %p26 = scmp.eq.s32.totalorder %s12, 0
      %p27 = por %p25, %p26
      %p28 = scmp.ne.s32.totalorder %s20, %s22
      %p29 = scmp.eq.s32.totalorder %s17, 1
      %p30 = por %p28, %p29
      %p31 = scmp.ne.s32.totalorder %s22, %s23
      %p32 = scmp.eq.s32.totalorder %s17, 0
      %p33 = por %p31, %p32
      %p34 = scmp.ne.s32.totalorder %s22, %s23
      %p35 = scmp.eq.s32.totalorder %s18, 1
      %p36 = por %p34, %p35
      %p38 = scmp.ne.s32.totalorder %s23, %s37
      %p39 = scmp.eq.s32.totalorder %s18, 0
      %p40 = por %p38, %p39
      %s42 = sadd.s32 %s41, 1
      %p45 = scmp.eq.s32.totalorder %s12, 1
      %p46 = scmp.ne.s32.totalorder %s41, %s43
      %p47 = scmp.eq.s32.totalorder %s12, 0
      %p48 = por %p46, %p47
      %p49 = scmp.ne.s32.totalorder %s41, %s43
      %p50 = scmp.eq.s32.totalorder %s17, 1
      %p51 = por %p49, %p50
      %p52 = scmp.ne.s32.totalorder %s43, %s44
      %p53 = scmp.eq.s32.totalorder %s17, 0
      %p54 = por %p52, %p53
      %p55 = scmp.ne.s32.totalorder %s43, %s44
      %p56 = scmp.eq.s32.totalorder %s18, 1
      %p57 = por %p55, %p56
      %p59 = scmp.ne.s32.totalorder %s44, %s58
      %p60 = scmp.eq.s32.totalorder %s18, 0
      %p61 = por %p59, %p60
      %s62 = ssub.s32 %s12, %s19
      %p63 = scmp.eq.s32.totalorder %s62, 0
      %s65 = sadd.s32 %s64, 1
      %s66 = scalar_select %p63, %s64, %s65
      %p69 = pneg %p63
      %p70 = scmp.eq.s32.totalorder %s12, 1
      %p71 = por %p69, %p70
      %p72 = scmp.ne.s32.totalorder %s64, %s67
      %p73 = scmp.eq.s32.totalorder %s12, 0
      %p74 = por %p72, %p73
      %p75 = scmp.ne.s32.totalorder %s64, %s67
      %p76 = scmp.eq.s32.totalorder %s17, 1
      %p77 = por %p75, %p76
      %p78 = scmp.ne.s32.totalorder %s67, %s68
      %p79 = scmp.eq.s32.totalorder %s17, 0
      %p80 = por %p78, %p79
      %p81 = scmp.ne.s32.totalorder %s67, %s68
      %p82 = scmp.eq.s32.totalorder %s18, 1
      %p83 = por %p81, %p82
      %p85 = scmp.ne.s32.totalorder %s68, %s84
      %p86 = scmp.eq.s32.totalorder %s18, 0
      %p87 = por %p85, %p86
      %p88 = scmp.le.s32.totalorder 1, %s12
      %p89 = scmp.lt.s32.totalorder %s12, 3
      %p90 = pnand %p88, %p89
      %p91 = pneg %p90
      // Predicated region
      $region9: #{tpu_custom_call.1} parent=5 // pred_check
        _
      $region10: #{tpu_custom_call.1} parent=5 // pred_check_branch
        %93 = sbr.rel (%p90) target = $region12
      $region11: #{tpu_custom_call.1} parent=5 // pred_region
        %s94 = ssub.s32 %s12, 1
        // Predicated region
        $region13: #{tpu_custom_call.1} parent=11 // pred_check
          %p95 = pneg %p33
        $region14: #{tpu_custom_call.1} parent=11 // pred_check_branch
          %97 = sbr.rel (%p95) target = $region16
        $region15: #{tpu_custom_call.1} parent=11 // pred_region
          %s99 = ssub.s32 16, 16
          %100 = vsyncadd [#allocation3], %s99
          %s102 = sshll.u32 [#allocation2], 4
          %s103 = int_to_ptr.vmem [resolvable:$true] %s102
          %105 = dma.hbm_to_vmem [thread:$0]  %s0, 16, %s103, [#allocation3]
        $region16: #{tpu_custom_call.1} parent=11 // pred_fallthru
          _
        // Predicated region
        $region17: #{tpu_custom_call.1} parent=11 // pred_check
          %p106 = pneg %p54
        $region18: #{tpu_custom_call.1} parent=11 // pred_check_branch
          %108 = sbr.rel (%p106) target = $region20
        $region19: #{tpu_custom_call.1} parent=11 // pred_region
          _
        $region20: #{tpu_custom_call.1} parent=11 // pred_fallthru
          _
      $region12: #{tpu_custom_call.1} parent=5 // pred_fallthru
        _
      %p109 = scmp.lt.s32.totalorder %s12, 2
      // Predicated region
      $region21: #{tpu_custom_call.1} parent=5 // pred_check
        %p110 = pneg %p109
      $region22: #{tpu_custom_call.1} parent=5 // pred_check_branch
        %112 = sbr.rel (%p110) target = $region24
      $region23: #{tpu_custom_call.1} parent=5 // pred_region
        _
      $region24: #{tpu_custom_call.1} parent=5 // pred_fallthru
        _
      %p113 = scmp.le.s32.totalorder 1, %s12
      %p114 = scmp.lt.s32.totalorder %s12, 3
      %p115 = pnand %p113, %p114
      %p116 = pneg %p115
      // Predicated region
      $region25: #{tpu_custom_call.1} parent=5 // pred_check
        _
      $region26: #{tpu_custom_call.1} parent=5 // pred_check_branch
        %118 = sbr.rel (%p115) target = $region28
      $region27: #{tpu_custom_call.1} parent=5 // pred_region
        %s119 = ssub.s32 %s12, 1
        // Predicated region
        $region29: #{tpu_custom_call.1} parent=27 // pred_check
          %p120 = pneg %p33
        $region30: #{tpu_custom_call.1} parent=27 // pred_check_branch
          %122 = sbr.rel (%p120) target = $region32
        $region31: #{tpu_custom_call.1} parent=27 // pred_region
          %123 = dma.done [#allocation3], 16
        $region32: #{tpu_custom_call.1} parent=27 // pred_fallthru
          _
        %p124 = pneg %p33
        %p125 = pneg %p30
        %p126 = pneg %p54
        %p127 = pneg %p51
        %p128 = pneg %p80
        %p129 = pneg %p77
        %s130 = sand.u32 %s67, 1
        %s131 = scalar_lea.sflag [#allocation4], %s130
        %s132 = sand.u32 %s67, 1
        %s133 = smul.addr %s132, 8
        %s134 = scalar_lea.vmem [#allocation5], %s133
        %v135 = vlaneseq
        %v136 = vshrl.u32 %v135, 7
        %s137 = smul.u32 %s17, 8
        %v138 = vstv %s137
        %v139 = vadd.s32 %v138, %v136
        %v140 = vcvt.s32.f32 %v139
        %v141 = vld [vmem:[#allocation2] sm:$0x1]
        %v143 = vlaneseq
        %v144 = vshrl.u32 %v143, 7
        %v145 = vsub.s32 0, %v144
        %v146 = vrot.slane %v141, %v145
        %v148 = vmul.f32 %v140, %v146
        %v149 = vld [vmem:[%s1] sm:$0x1]
        %v151 = vlaneseq
        %v152 = vshrl.u32 %v151, 7
        %v153 = vsub.s32 0, %v152
        %v154 = vrot.slane %v149, %v153
        %v156 = vadd.f32 %v148, %v154
        %v157 = vand.u32 2147483647, %v156
        %vm158 = vcmp.le.f32.partialorder %v157, 0.7853982
        %vm159 = vcmp.lt.s32.totalorder %v156, 0
        %v160 = vand.u32 %v156, 2139095040
        %v161 = vshrl.u32 %v160, 23
        %v162 = vsub.s32 %v161, 127
        %v163 = vand.u32 2147483647, %v156
        %v164 = vand.u32 %v163, 8388607
        %v165 = vor.u32 %v164, 8388608
        %v166 = vsub.s32 0, %v165
        %v167 = vadd.s32 %v162, 1
        %vm168 = vcmp.gt.s32.totalorder %v167, 0
        %v169 = vsel %vm168, %v167, 0
        %v170 = vshrl.u32 %v169, 5
        %v171 = vand.u32 %v169, 31
        %v172 = vsub.s32 32, %v171
        %v173 = vshrl.u32 683565275, %v172
        %v174 = vshll.u32 683565275, %v171
        %v175 = vshrl.u32 2475754826, %v172
        %v176 = vor.u32 %v174, %v175
        %v177 = vshll.u32 2475754826, %v171
        %v178 = vshrl.u32 2131351028, %v172
        %v179 = vor.u32 %v177, %v178
        %v180 = vshll.u32 2131351028, %v171
        %v181 = vshrl.u32 2102212464, %v172
        %v182 = vor.u32 %v180, %v181
        %v183 = vshll.u32 2102212464, %v171
        %v184 = vshrl.u32 920167782, %v172
        %v185 = vor.u32 %v183, %v184
        %v186 = vshll.u32 920167782, %v171
        %v187 = vshrl.u32 1326507024, %v172
        %v188 = vor.u32 %v186, %v187
        %vm189 = vcmp.lt.s32.totalorder %v170, 1
        %vm190 = vcmp.lt.s32.totalorder %v170, 2
        %vm191 = vcmp.lt.s32.totalorder %v170, 3
        %vm192 = vcmp.lt.s32.totalorder %v170, 4
        %v193 = vsel %vm189, %v173, %v176
        %v194 = vsel %vm192, %v182, 2102212464
        %v195 = vsel %vm191, %v179, %v194
        %v196 = vsel %vm190, %v193, %v195
        %v197 = vsel %vm189, %v176, %v179
        %v198 = vsel %vm192, %v185, 920167782
        %v199 = vsel %vm191, %v182, %v198
        %v200 = vsel %vm190, %v197, %v199
        %v201 = vsel %vm189, %v179, %v182
        %v202 = vsel %vm192, %v188, 1326507024
        %v203 = vsel %vm191, %v185, %v202
        %v204 = vsel %vm190, %v201, %v203
        %v205 = vshll.u32 %v165, 8
        %v206 = vmul.u32.u64.compose %v205, %v204
        %v207 = vextract.low.u32 %v206
        %v208 = vextract.high.u32 %v206
        %v209 = vmul.u32.u64.compose %v205, %v200
        %v210 = vextract.low.u32 %v209
        %v211 = vextract.high.u32 %v209
        %v212 = vmul.u32 %v205, %v196
        %v213 = vadd.s32 %v208, %v210
        %vm214 = vc.u32 %v208, %v210
        %v215 = vadd.s32 %v211, 1
        %v216 = vsel %vm214, %v215, %v211
        %v217 = vadd.s32 %v212, %v216
        %v218 = vadd.s32 %v217, 536870912
        %v219 = vshrl.u32 %v218, 30
        %v220 = vshll.u32 %v219, 30
        %v221 = vsub.s32 %v217, %v220
        %vm222 = vcmp.lt.s32.totalorder %v221, 0
        %v223 = vsub.s32 0, %v221
        %v224 = vsel %vm222, %v223, %v221
        %v225 = vclz %v224
        %v226 = vsub.s32 %v225, 2
        %vm227 = vcmp.gt.s32.totalorder 0, %v226
        %v228 = vsel %vm227, 0, %v226
        %v229 = vsub.s32 32, %v228
        %v230 = vshll.u32 %v221, %v228
        %v231 = vshrl.u32 %v213, %v229
        %v232 = vor.u32 %v230, %v231
        %v233 = vsub.s32 4294967266, %v228
        %v234 = vadd.s32 %v233, 127
        %v235 = vshll.u32 %v234, 23
        %v236 = vor.u32 4788187, %v235
        %v237 = vand.u32 2147483647, %v236
        %v239 = vcvt.s32.f32 %v232
        %v240 = vmul.f32 %v239, %v237
        %v241 = vxor.u32 %v240, 2147483648
        %v242 = vsel %vm159, %v241, %v240
        %v243 = vsub.s32 4, %v219
        %v244 = vsel %vm159, %v243, %v219
        %v245 = vsel %vm158, %v156, %v242
        %v246 = vsel %vm158, 0, %v244
        %v247 = vcosq.f32.pop %v245
        %v248 = vsinq.f32.pop %v245
        %vm249 = vweird.f32 %v156
        %v250 = vadd.s32 %v246, 3
        %v251 = vand.u32 %v250, 3
        %vm252 = vcmp.lt.s32.totalorder %v251, 2
        %vm253 = vcmp.eq.s32.totalorder %v251, 0
        %v254 = vxor.u32 %v248, 2147483648
        %v255 = vsel %vm253, %v247, %v254
        %vm256 = vcmp.eq.s32.totalorder %v251, 2
        %v257 = vxor.u32 %v247, 2147483648
        %v258 = vsel %vm256, %v257, %v248
        %v259 = vsel %vm252, %v255, %v258
        %v260 = vsel %vm249, nan, %v259
        %261 = vst [vmem:[%s134] sm:$0xff] %v260
        %s262 = sand.u32 %s67, 1
        %s263 = scalar_lea.sflag [#allocation4], %s262
        %s264 = sand.u32 %s67, 1
        %s265 = smul.addr %s264, 8
        %s266 = scalar_lea.vmem [#allocation5], %s265
        // Predicated region
        $region33: #{tpu_custom_call.1} parent=27 // pred_check
          %p267 = pneg %p77
        $region34: #{tpu_custom_call.1} parent=27 // pred_check_branch
          %269 = sbr.rel (%p267) target = $region36
        $region35: #{tpu_custom_call.1} parent=27 // pred_region
          %s271 = ssub.s32 128, 128
          %272 = vsyncadd %s263, %s271
          %s273 = smul.addr %s17, 128
          %s274 = scalar_lea.hbm %s2, %s273
          %s276 = sshll.u32 %s266, 4
          %s277 = int_to_ptr.vmem [resolvable:$true] %s276
          %279 = dma.vmem_to_hbm [thread:$0]  %s277, 128, %s274, %s263
        $region36: #{tpu_custom_call.1} parent=27 // pred_fallthru
          _
      $region28: #{tpu_custom_call.1} parent=5 // pred_fallthru
        _
      %p280 = scmp.le.s32.totalorder 2, %s12
      // Predicated region
      $region37: #{tpu_custom_call.1} parent=5 // pred_check
        %p281 = pneg %p280
      $region38: #{tpu_custom_call.1} parent=5 // pred_check_branch
        %283 = sbr.rel (%p281) target = $region40
      $region39: #{tpu_custom_call.1} parent=5 // pred_region
        %s284 = ssub.s32 %s12, 2
        // Predicated region
        $region41: #{tpu_custom_call.1} parent=39 // pred_check
          %p285 = pneg %p83
        $region42: #{tpu_custom_call.1} parent=39 // pred_check_branch
          %287 = sbr.rel (%p285) target = $region44
        $region43: #{tpu_custom_call.1} parent=39 // pred_region
          %s288 = sand.u32 %s68, 1
          %s289 = scalar_lea.sflag [#allocation4], %s288
          %s290 = sand.u32 %s68, 1
          %s291 = smul.addr %s290, 8
          %s292 = scalar_lea.vmem [#allocation5], %s291
          %293 = dma.done %s289, 128
        $region44: #{tpu_custom_call.1} parent=39 // pred_fallthru
          _
      $region40: #{tpu_custom_call.1} parent=5 // pred_fallthru
        _
    $region6: #{tpu_custom_call.1} parent=1 // loop_footer
      %s16 = sadd.s32 1, %s12
    $region7: #{tpu_custom_call.1} parent=1 // loop_footer_branch
      %11 = sbr.rel target = $region3
    $region8: #{tpu_custom_call.1} parent=1 // loop_exit
      _
    %294 = vsyncpa [#allocation3], 1
    %s295 = scalar_lea.sflag [#allocation3], 1
    %296 = vsyncpa %s295, 1
    %297 = vsyncpa [#allocation4], 1
    %s298 = scalar_lea.sflag [#allocation4], 1
    %299 = vsyncpa %s298, 1

</llo_original>
